<compile_context>
chip_gen: v5e
topology: v5e:2x2
jax: 0.10.0
libtpu: 0.0.40
codegen_flags: <defaults>
</compile_context>

<pallas_src>
import math

import jax
import jax.numpy as jnp
from jax import lax
from jax.experimental import pallas as pl
from jax.experimental.pallas import tpu as pltpu


def _cdiv(a, b):
    return -(-a // b)


def _round_up(a, m):
    return _cdiv(a, m) * m


def _vmem_budget_bytes():
    """~75% of per-TensorCore VMEM (≈48 MiB on v7x, ≈96 MiB on v5e/v6e)."""
    try:
        cap = int(pltpu.get_tpu_info().vmem_capacity_bytes)
    except Exception:
        cap = 128 << 20
    return max(16 << 20, (cap * 3) // 4)


def _epilogue(h, b_ref, g_ref, be_ref, res_ref, out_ref, eps):
    """f32 bias (+ residual + LayerNorm) epilogue, then store in out dtype."""
    h = h + b_ref[...].astype(jnp.float32)
    # Dropout: identity (eval mode).
    if eps is not None:
        h = h + res_ref[...].astype(jnp.float32)
        # Two-pass statistics (numerically safer than E[h^2] - mean^2).
        mean = jnp.mean(h, axis=-1, keepdims=True)
        c = h - mean
        var = jnp.mean(c * c, axis=-1, keepdims=True)
        h = (c * lax.rsqrt(var + eps)) * g_ref[...].astype(jnp.float32) \
            + be_ref[...].astype(jnp.float32)
    out_ref[...] = h.astype(out_ref.dtype)


def _make_kernel(eps, with_ln):
    """Single-K-step kernel: full weight resident in VMEM."""
    if with_ln:
        def kernel(x_ref, w_ref, b_ref, g_ref, be_ref, res_ref, out_ref):
            h = jnp.dot(x_ref[...], w_ref[...],
                        preferred_element_type=jnp.float32)
            _epilogue(h, b_ref, g_ref, be_ref, res_ref, out_ref, eps)
    else:
        def kernel(x_ref, w_ref, b_ref, out_ref):
            h = jnp.dot(x_ref[...], w_ref[...],
                        preferred_element_type=jnp.float32)
            _epilogue(h, b_ref, None, None, None, out_ref, None)
    return kernel


def _make_ktiled_kernel(eps, with_ln):
    """Inner 'arbitrary' K axis: f32 accumulator scratch, epilogue on last k."""
    if with_ln:
        def kernel(x_ref, w_ref, b_ref, g_ref, be_ref, res_ref, out_ref, acc_ref):
            k = pl.program_id(1)

            @pl.when(k == 0)
            def _():
                acc_ref[...] = jnp.zeros_like(acc_ref)

            acc_ref[...] += jnp.dot(x_ref[...], w_ref[...],
                                    preferred_element_type=jnp.float32)

            @pl.when(k == pl.num_programs(1) - 1)
            def _():
                _epilogue(acc_ref[...], b_ref, g_ref, be_ref, res_ref,
                          out_ref, eps)
    else:
        def kernel(x_ref, w_ref, b_ref, out_ref, acc_ref):
            k = pl.program_id(1)

            @pl.when(k == 0)
            def _():
                acc_ref[...] = jnp.zeros_like(acc_ref)

            acc_ref[...] += jnp.dot(x_ref[...], w_ref[...],
                                    preferred_element_type=jnp.float32)

            @pl.when(k == pl.num_programs(1) - 1)
            def _():
                _epilogue(acc_ref[...], b_ref, None, None, None, out_ref, None)
    return kernel


def linear_then_layernorm(x, w_t, b, gamma=None, beta=None, input_tensor=None,
                          layer_norm_eps=None, *, row_tile=1024, k_tile=None,
                          out_dtype=None):
    """Fused Linear (+ residual + LayerNorm) forward.

    x:            [..., input_dim]   (any float dtype; bf16 halves streamed bytes)
    w_t:          [input_dim, output_dim]  pre-transposed nn.Linear weight
                  (pre-cast to bf16 once at load time for a bf16 MXU path)
    b/gamma/beta: [output_dim]
    input_tensor: [..., output_dim]  residual (required when layer_norm_eps set)
    k_tile:       force K-tiling with this chunk size (multiple of 128); by
                  default K-tiling triggers only when the weight won't fit VMEM.
    """
    with_ln = layer_norm_eps is not None
    if with_ln:
        if input_tensor is None:
            raise ValueError("input_tensor is required when layer_norm_eps is set")
        if gamma is None or beta is None:
            raise ValueError("gamma and beta are required when layer_norm_eps is set")
    eps = float(layer_norm_eps) if with_ln else None

    orig_shape = x.shape
    d_in = int(orig_shape[-1])
    d_out = int(w_t.shape[1])
    out_dtype = x.dtype if out_dtype is None else out_dtype
    rows = int(math.prod(orig_shape[:-1]))

    x2 = x.reshape(rows, d_in)
    res2 = input_tensor.reshape(rows, d_out) if with_ln else None
    b2 = b.reshape(1, d_out).astype(jnp.float32)
    g2 = gamma.reshape(1, d_out).astype(jnp.float32) if with_ln else None
    be2 = beta.reshape(1, d_out).astype(jnp.float32) if with_ln else None

    x_bytes = jnp.dtype(x2.dtype).itemsize
    w_bytes = jnp.dtype(w_t.dtype).itemsize
    res_bytes = jnp.dtype(res2.dtype).itemsize if with_ln else 0
    o_bytes = jnp.dtype(out_dtype).itemsize

    # ---- VMEM sizing (generation-aware) -------------------------------------
    budget = _vmem_budget_bytes()
    param_bytes = (3 if with_ln else 1) * d_out * 4        # bias/gamma/beta (f32)
    avail = budget - (4 << 20) - param_bytes               # headroom for scratch
    weight_bytes = d_in * d_out * w_bytes

    if k_tile is None and weight_bytes <= avail // 2:
        use_ktile = False
        nk, tk = 1, d_in
        weight_vmem = weight_bytes                          # resident, 1 buffer
    else:
        # Stream the weight in (tk, d_out) double-buffered chunks along K.
        use_ktile = True
        if k_tile is not None:
            tk = _round_up(int(k_tile), 128)
        else:
            tk = max(128, ((avail // 4) // (2 * d_out * w_bytes)) // 128 * 128)
            while tk > 128 and d_in % tk:                   # prefer tk | d_in
                tk -= 128
        tk = min(tk, _round_up(d_in, 128))
        nk = _cdiv(d_in, tk)
        weight_vmem = 2 * tk * d_out * w_bytes
        if d_in % tk:
            # Zero-pad K so a partial K block cannot contaminate the accumulate.
            # TODO(synk): pre-pad W once at parameter-load time for such shapes
            #             to avoid this per-call copy of x.
            kpad = nk * tk - d_in
            x2 = jnp.pad(x2, ((0, 0), (0, kpad)))
            w_t = jnp.pad(w_t, ((0, kpad), (0, 0)))
            d_in = d_in + kpad

    # ---- Row tile sizing -----------------------------------------------------
    min_itemsize = min([x_bytes, o_bytes] + ([res_bytes] if with_ln else []))
    min_sub = 8 * (4 // max(1, min_itemsize))               # 8 / 16 / 32 rows
    per_row = (2 * tk * x_bytes                             # x tiles (2 buffers)
               + 2 * d_out * o_bytes                        # out tiles
               + (2 * d_out * res_bytes if with_ln else 0)  # residual tiles
               + (d_out * 4 if use_ktile else 0))           # f32 acc scratch
    tile_budget = max(per_row * min_sub, avail - weight_vmem)
    rt_cap = max(min_sub, (tile_budget // per_row) // min_sub * min_sub)
    rt = max(min_sub, min(int(row_tile), rt_cap, _round_up(rows, min_sub)))
    rt = max(min_sub, (rt // min_sub) * min_sub)
    # Give both v7x TensorCores work: >=2 steps on the 'parallel' row axis.
    if _cdiv(rows, rt) < 2 and rows > min_sub:
        rt = max(min_sub, _round_up(_cdiv(rows, 2), min_sub))
    grid_rows = _cdiv(rows, rt)

    est_base = weight_vmem + param_bytes + rt * per_row + (4 << 20)

    # ---- Build + run ---------------------------------------------------------
    def _run(single_buffer_params):
        pm = {"pipeline_mode": pl.Buffered(1)} if single_buffer_params else {}
        w_pm = pm if not use_ktile else {}                  # streamed weight: 2 bufs

        est = est_base
        if not use_ktile and not single_buffer_params:
            est += weight_bytes                             # fallback 2nd weight buf
        vmem_limit = int(min(budget, max(32 << 20, est)))

        if not use_ktile:
            grid = (grid_rows,)
            sem = ("parallel",)
            x_spec = pl.BlockSpec((rt, d_in), lambda i: (i, 0))
            w_spec = pl.BlockSpec((d_in, d_out), lambda i: (0, 0), **w_pm)
            b_spec = pl.BlockSpec((1, d_out), lambda i: (0, 0), **pm)
            g_spec = pl.BlockSpec((1, d_out), lambda i: (0, 0), **pm)
            be_spec = pl.BlockSpec((1, d_out), lambda i: (0, 0), **pm)
            v_spec = pl.BlockSpec((rt, d_out), lambda i: (i, 0))
            out_spec = pl.BlockSpec((rt, d_out), lambda i: (i, 0))
            scratch = []
            kernel = _make_kernel(eps, with_ln)
        else:
            grid = (grid_rows, nk)
            sem = ("parallel", "arbitrary")
            x_spec = pl.BlockSpec((rt, tk), lambda i, k: (i, k))
            w_spec = pl.BlockSpec((tk, d_out), lambda i, k: (k, 0))
            b_spec = pl.BlockSpec((1, d_out), lambda i, k: (0, 0), **pm)
            g_spec = pl.BlockSpec((1, d_out), lambda i, k: (0, 0), **pm)
            be_spec = pl.BlockSpec((1, d_out), lambda i, k: (0, 0), **pm)
            v_spec = pl.BlockSpec((rt, d_out), lambda i, k: (i, 0))
            out_spec = pl.BlockSpec((rt, d_out), lambda i, k: (i, 0))
            scratch = [pltpu.VMEM((rt, d_out), jnp.float32)]
            kernel = _make_ktiled_kernel(eps, with_ln)

        if with_ln:
            in_specs = [x_spec, w_spec, b_spec, g_spec, be_spec, v_spec]
            args = (x2, w_t, b2, g2, be2, res2)
        else:
            in_specs = [x_spec, w_spec, b_spec]
            args = (x2, w_t, b2)

        return pl.pallas_call(
            kernel,
            out_shape=jax.ShapeDtypeStruct((rows, d_out), out_dtype),
            grid_spec=pltpu.PrefetchScalarGridSpec(
                num_scalar_prefetch=0,
                grid=grid,
                in_specs=in_specs,
                out_specs=out_spec,
                scratch_shapes=scratch),
            compiler_params=pltpu.CompilerParams(
                dimension_semantics=sem, vmem_limit_bytes=vmem_limit),
        )(*args)

    try:
        out = _run(True)
    except Exception:
        # Fallback for JAX versions that reject pl.Buffered(1) on the classic
        # pallas_call pipeline (costs one extra weight-sized VMEM buffer).
        out = _run(False)

    return out.reshape(orig_shape[:-1] + (d_out,))


def _reference(x2, w_t, b, gamma, beta, res2, eps):
    h = x2.astype(jnp.float32) @ w_t.astype(jnp.float32) + b
    if eps is None:
        return h
    h = h + res2.astype(jnp.float32)
    mean = jnp.mean(h, axis=-1, keepdims=True)
    var = jnp.mean((h - mean) ** 2, axis=-1, keepdims=True)
    return (h - mean) / jnp.sqrt(var + eps) * gamma + beta


if __name__ == "__main__":
    # Module config: input_dim=32, output_dim=64, layer_norm_eps=1e-12
    batch, seq, input_dim, output_dim = 2, 8, 32, 64
    eps = 1e-12

    key = jax.random.PRNGKey(0)
    keys = jax.random.split(key, 10)

    bound = 1.0 / math.sqrt(input_dim)
    w = jax.random.uniform(keys[0], (output_dim, input_dim), jnp.float32, -bound, bound)
    b = jax.random.uniform(keys[1], (output_dim,), jnp.float32, -bound, bound)
    gamma = 1.0 + 0.01 * jax.random.normal(keys[2], (output_dim,), jnp.float32)
    beta = 0.01 * jax.random.normal(keys[3], (output_dim,), jnp.float32)
    x = jax.random.normal(keys[4], (batch, seq, input_dim), jnp.float32)
    res = jax.random.normal(keys[5], (batch, seq, output_dim), jnp.float32)
    w_t = w.T  # [input_dim, output_dim]

    ref = _reference(x.reshape(-1, input_dim), w_t, b, gamma, beta,
                     res.reshape(-1, output_dim), eps
                     ).reshape(batch, seq, output_dim)

    # 1) f32 fused Linear + residual + LayerNorm.
    out = jax.block_until_ready(
        linear_then_layernorm(x, w_t, b, gamma, beta, res, layer_norm_eps=eps))
    assert out.shape == (batch, seq, output_dim)
    assert jnp.allclose(out, ref, atol=1e-4, rtol=1e-4), "f32 mismatch vs reference"

    # 2) Non-divisible row count -> partial boundary block (no wrapper padding).
    x_odd = jax.random.normal(keys[6], (15, input_dim), jnp.float32)
    res_odd = jax.random.normal(keys[7], (15, output_dim), jnp.float32)
    out_odd = jax.block_until_ready(
        linear_then_layernorm(x_odd, w_t, b, gamma, beta, res_odd,
                              layer_norm_eps=eps, row_tile=8))
    ref_odd = _reference(x_odd, w_t, b, gamma, beta, res_odd, eps)
    assert out_odd.shape == (15, output_dim)
    assert jnp.allclose(out_odd, ref_odd, atol=1e-4, rtol=1e-4), "partial-block mismatch"

    # 3) bf16-streamed activations / weight (producer-side one-time cast;
    #    f32 accumulation and f32 LayerNorm epilogue inside the kernel).
    x_bf = x.astype(jnp.bfloat16)
    w_bf = w_t.astype(jnp.bfloat16)
    res_bf = res.astype(jnp.bfloat16)
    out_bf = jax.block_until_ready(
        linear_then_layernorm(x_bf, w_bf, b, gamma, beta, res_bf, layer_norm_eps=eps))
    assert out_bf.shape == (batch, seq, output_dim)
    assert jnp.allclose(out_bf.astype(jnp.float32), ref, atol=5e-2, rtol=5e-2), \
        "bf16 mismatch vs reference"

    # 4) Linear-only path (layer_norm_eps=None; dropout identity in eval).
    out_lin = jax.block_until_ready(
        linear_then_layernorm(x, w_t, b, layer_norm_eps=None))
    ref_lin = _reference(x.reshape(-1, input_dim), w_t, b, None, None, None, None
                         ).reshape(batch, seq, output_dim)
    assert out_lin.shape == (batch, seq, output_dim)
    assert jnp.allclose(out_lin, ref_lin, atol=1e-4, rtol=1e-4), "linear-only mismatch"

    # 5) Forced K-tiling path (f32 accumulator scratch + epilogue on last K step).
    d_in_big, d_out_big, rows_big = 256, 128, 32
    wb = 0.05 * jax.random.normal(keys[8], (d_in_big, d_out_big), jnp.float32)
    bb = jnp.zeros((d_out_big,), jnp.float32)
    gb = jnp.ones((d_out_big,), jnp.float32)
    beb = jnp.zeros((d_out_big,), jnp.float32)
    xb = jax.random.normal(keys[9], (rows_big, d_in_big), jnp.float32)
    rb = jax.random.normal(keys[5], (rows_big, d_out_big), jnp.float32)
    out_k = jax.block_until_ready(
        linear_then_layernorm(xb, wb, bb, gb, beb, rb, layer_norm_eps=eps, k_tile=128))
    ref_k = _reference(xb, wb, bb, gb, beb, rb, eps)
    assert out_k.shape == (rows_big, d_out_big)
    assert jnp.allclose(out_k, ref_k, atol=1e-4, rtol=1e-4), "K-tiled mismatch"

    print("KERNEL_OK")
</pallas_src>

<mosaic_0001>
module attributes {stable_mosaic.version = 11 : i64} {
  func.func @kernel(%arg0: i32, %arg1: memref<8x32xf32, #tpu.memory_space<vmem>>, %arg2: memref<32x64xf32, #tpu.memory_space<vmem>>, %arg3: memref<1x64xf32, #tpu.memory_space<vmem>>, %arg4: memref<1x64xf32, #tpu.memory_space<vmem>>, %arg5: memref<1x64xf32, #tpu.memory_space<vmem>>, %arg6: memref<8x64xf32, #tpu.memory_space<vmem>>, %arg7: memref<8x64xf32, #tpu.memory_space<vmem>>) attributes {dimension_semantics = [#tpu.dimension_semantics<parallel>], iteration_bounds = array<i64: 2>, scalar_prefetch = 0 : i64, scratch_operands = 0 : i64, tpu.core_type = #tpu.core_type<tc>, window_params = [{transform_indices = @transform_0, window_bounds = array<i64: 8, 32>}, {pipeline_mode = #tpu.pipeline_mode<synchronous>, transform_indices = @transform_1, window_bounds = array<i64: 32, 64>}, {pipeline_mode = #tpu.pipeline_mode<synchronous>, transform_indices = @transform_2, window_bounds = array<i64: 1, 64>}, {pipeline_mode = #tpu.pipeline_mode<synchronous>, transform_indices = @transform_3, window_bounds = array<i64: 1, 64>}, {pipeline_mode = #tpu.pipeline_mode<synchronous>, transform_indices = @transform_4, window_bounds = array<i64: 1, 64>}, {transform_indices = @transform_5, window_bounds = array<i64: 8, 64>}, {transform_indices = @transform_6, window_bounds = array<i64: 8, 64>}]} {
    %c0 = arith.constant 0 : index
    %c0_0 = arith.constant 0 : index
    %0 = vector.load %arg1[%c0, %c0_0] : memref<8x32xf32, #tpu.memory_space<vmem>>, vector<8x32xf32>
    %c0_1 = arith.constant 0 : index
    %c0_2 = arith.constant 0 : index
    %1 = vector.load %arg2[%c0_1, %c0_2] : memref<32x64xf32, #tpu.memory_space<vmem>>, vector<32x64xf32>
    %cst = arith.constant dense<0.000000e+00> : vector<8x64xf32>
    %2 = tpu.matmul %0, %1, %cst {dimension_numbers = #tpu.dot_dimension_numbers<[1], [0], [0], [1], [0, 0, 1, 1], [], []>} : vector<8x32xf32>, vector<32x64xf32>, vector<8x64xf32> -> vector<8x64xf32>
    %c0_3 = arith.constant 0 : index
    %c0_4 = arith.constant 0 : index
    %3 = vector.load %arg3[%c0_3, %c0_4] : memref<1x64xf32, #tpu.memory_space<vmem>>, vector<1x64xf32>
    %4 = vector.broadcast %3 : vector<1x64xf32> to vector<8x64xf32>
    %5 = arith.addf %2, %4 : vector<8x64xf32>
    %c0_5 = arith.constant 0 : index
    %c0_6 = arith.constant 0 : index
    %6 = vector.load %arg6[%c0_5, %c0_6] : memref<8x64xf32, #tpu.memory_space<vmem>>, vector<8x64xf32>
    %7 = arith.addf %5, %6 : vector<8x64xf32>
    %cst_7 = arith.constant dense<0.000000e+00> : vector<8xf32>
    %8 = vector.multi_reduction <add>, %7, %cst_7 [1] : vector<8x64xf32> to vector<8xf32>
    %9 = vector.shape_cast %8 : vector<8xf32> to vector<8x1xf32>
    %cst_8 = arith.constant 6.400000e+01 : f32
    %10 = vector.broadcast %cst_8 : f32 to vector<8x1xf32>
    %11 = arith.divf %9, %10 : vector<8x1xf32>
    %12 = vector.broadcast %11 : vector<8x1xf32> to vector<8x64xf32>
    %13 = arith.subf %7, %12 : vector<8x64xf32>
    %14 = arith.mulf %13, %13 : vector<8x64xf32>
    %cst_9 = arith.constant dense<0.000000e+00> : vector<8xf32>
    %15 = vector.multi_reduction <add>, %14, %cst_9 [1] : vector<8x64xf32> to vector<8xf32>
    %16 = vector.shape_cast %15 : vector<8xf32> to vector<8x1xf32>
    %cst_10 = arith.constant 6.400000e+01 : f32
    %17 = vector.broadcast %cst_10 : f32 to vector<8x1xf32>
    %18 = arith.divf %16, %17 : vector<8x1xf32>
    %cst_11 = arith.constant 9.99999996E-13 : f32
    %19 = vector.broadcast %cst_11 : f32 to vector<8x1xf32>
    %20 = arith.addf %18, %19 : vector<8x1xf32>
    %21 = math.rsqrt %20 : vector<8x1xf32>
    %22 = vector.broadcast %21 : vector<8x1xf32> to vector<8x64xf32>
    %23 = arith.mulf %13, %22 : vector<8x64xf32>
    %c0_12 = arith.constant 0 : index
    %c0_13 = arith.constant 0 : index
    %24 = vector.load %arg4[%c0_12, %c0_13] : memref<1x64xf32, #tpu.memory_space<vmem>>, vector<1x64xf32>
    %25 = vector.broadcast %24 : vector<1x64xf32> to vector<8x64xf32>
    %26 = arith.mulf %23, %25 : vector<8x64xf32>
    %c0_14 = arith.constant 0 : index
    %c0_15 = arith.constant 0 : index
    %27 = vector.load %arg5[%c0_14, %c0_15] : memref<1x64xf32, #tpu.memory_space<vmem>>, vector<1x64xf32>
    %28 = vector.broadcast %27 : vector<1x64xf32> to vector<8x64xf32>
    %29 = arith.addf %26, %28 : vector<8x64xf32>
    %c0_16 = arith.constant 0 : index
    %c0_17 = arith.constant 0 : index
    %30 = vector.load %arg7[%c0_16, %c0_17] : memref<8x64xf32, #tpu.memory_space<vmem>>, vector<8x64xf32>
    tpu.vector_store %arg7[%c0_16, %c0_17], %29 {strides = array<i32>} : memref<8x64xf32, #tpu.memory_space<vmem>>, vector<8x64xf32>,
    return
  }
  func.func @transform_0(%arg0: i32) -> (i32, i32) {
    %c0_i32 = arith.constant 0 : i32
    %c0_i32_0 = arith.constant 0 : i32
    return %arg0, %c0_i32 : i32, i32
  }
  func.func @transform_1(%arg0: i32) -> (i32, i32) {
    %c0_i32 = arith.constant 0 : i32
    %c0_i32_0 = arith.constant 0 : i32
    %c0_i32_1 = arith.constant 0 : i32
    return %c0_i32, %c0_i32_0 : i32, i32
  }
  func.func @transform_2(%arg0: i32) -> (i32, i32) {
    %c0_i32 = arith.constant 0 : i32
    %c0_i32_0 = arith.constant 0 : i32
    %c0_i32_1 = arith.constant 0 : i32
    return %c0_i32, %c0_i32_0 : i32, i32
  }
  func.func @transform_3(%arg0: i32) -> (i32, i32) {
    %c0_i32 = arith.constant 0 : i32
    %c0_i32_0 = arith.constant 0 : i32
    %c0_i32_1 = arith.constant 0 : i32
    return %c0_i32, %c0_i32_0 : i32, i32
  }
  func.func @transform_4(%arg0: i32) -> (i32, i32) {
    %c0_i32 = arith.constant 0 : i32
    %c0_i32_0 = arith.constant 0 : i32
    %c0_i32_1 = arith.constant 0 : i32
    return %c0_i32, %c0_i32_0 : i32, i32
  }
  func.func @transform_5(%arg0: i32) -> (i32, i32) {
    %c0_i32 = arith.constant 0 : i32
    %c0_i32_0 = arith.constant 0 : i32
    return %arg0, %c0_i32 : i32, i32
  }
  func.func @transform_6(%arg0: i32) -> (i32, i32) {
    %c0_i32 = arith.constant 0 : i32
    %c0_i32_0 = arith.constant 0 : i32
    return %arg0, %c0_i32 : i32, i32
  }
}

module attributes {stable_mosaic.version = 11 : i64} {
  func.func @kernel(%arg0: i32, %arg1: memref<8x32xf32, #tpu.memory_space<vmem>>, %arg2: memref<32x64xf32, #tpu.memory_space<vmem>>, %arg3: memref<1x64xf32, #tpu.memory_space<vmem>>, %arg4: memref<1x64xf32, #tpu.memory_space<vmem>>, %arg5: memref<1x64xf32, #tpu.memory_space<vmem>>, %arg6: memref<8x64xf32, #tpu.memory_space<vmem>>, %arg7: memref<8x64xf32, #tpu.memory_space<vmem>>) attributes {dimension_semantics = [#tpu.dimension_semantics<parallel>], iteration_bounds = array<i64: 2>, scalar_prefetch = 0 : i64, scratch_operands = 0 : i64, tpu.core_type = #tpu.core_type<tc>, window_params = [{transform_indices = @transform_0, window_bounds = array<i64: 8, 32>}, {pipeline_mode = #tpu.pipeline_mode<synchronous>, transform_indices = @transform_1, window_bounds = array<i64: 32, 64>}, {pipeline_mode = #tpu.pipeline_mode<synchronous>, transform_indices = @transform_2, window_bounds = array<i64: 1, 64>}, {pipeline_mode = #tpu.pipeline_mode<synchronous>, transform_indices = @transform_3, window_bounds = array<i64: 1, 64>}, {pipeline_mode = #tpu.pipeline_mode<synchronous>, transform_indices = @transform_4, window_bounds = array<i64: 1, 64>}, {transform_indices = @transform_5, window_bounds = array<i64: 8, 64>}, {transform_indices = @transform_6, window_bounds = array<i64: 8, 64>}]} {
    %c0 = arith.constant 0 : index
    %c0_0 = arith.constant 0 : index
    %0 = vector.load %arg1[%c0, %c0_0] : memref<8x32xf32, #tpu.memory_space<vmem>>, vector<8x32xf32>
    %c0_1 = arith.constant 0 : index
    %c0_2 = arith.constant 0 : index
    %1 = vector.load %arg2[%c0_1, %c0_2] : memref<32x64xf32, #tpu.memory_space<vmem>>, vector<32x64xf32>
    %cst = arith.constant dense<0.000000e+00> : vector<8x64xf32>
    %2 = tpu.matmul %0, %1, %cst {dimension_numbers = #tpu.dot_dimension_numbers<[1], [0], [0], [1], [0, 0, 1, 1], [], []>} : vector<8x32xf32>, vector<32x64xf32>, vector<8x64xf32> -> vector<8x64xf32>
    %c0_3 = arith.constant 0 : index
    %c0_4 = arith.constant 0 : index
    %3 = vector.load %arg3[%c0_3, %c0_4] : memref<1x64xf32, #tpu.memory_space<vmem>>, vector<1x64xf32>
    %4 = vector.broadcast %3 : vector<1x64xf32> to vector<8x64xf32>
    %5 = arith.addf %2, %4 : vector<8x64xf32>
    %c0_5 = arith.constant 0 : index
    %c0_6 = arith.constant 0 : index
    %6 = vector.load %arg6[%c0_5, %c0_6] : memref<8x64xf32, #tpu.memory_space<vmem>>, vector<8x64xf32>
    %7 = arith.addf %5, %6 : vector<8x64xf32>
    %cst_7 = arith.constant dense<0.000000e+00> : vector<8xf32>
    %8 = vector.multi_reduction <add>, %7, %cst_7 [1] : vector<8x64xf32> to vector<8xf32>
    %9 = vector.shape_cast %8 : vector<8xf32> to vector<8x1xf32>
    %cst_8 = arith.constant 6.400000e+01 : f32
    %10 = vector.broadcast %cst_8 : f32 to vector<8x1xf32>
    %11 = arith.divf %9, %10 : vector<8x1xf32>
    %12 = vector.broadcast %11 : vector<8x1xf32> to vector<8x64xf32>
    %13 = arith.subf %7, %12 : vector<8x64xf32>
    %14 = arith.mulf %13, %13 : vector<8x64xf32>
    %cst_9 = arith.constant dense<0.000000e+00> : vector<8xf32>
    %15 = vector.multi_reduction <add>, %14, %cst_9 [1] : vector<8x64xf32> to vector<8xf32>
    %16 = vector.shape_cast %15 : vector<8xf32> to vector<8x1xf32>
    %cst_10 = arith.constant 6.400000e+01 : f32
    %17 = vector.broadcast %cst_10 : f32 to vector<8x1xf32>
    %18 = arith.divf %16, %17 : vector<8x1xf32>
    %cst_11 = arith.constant 9.99999996E-13 : f32
    %19 = vector.broadcast %cst_11 : f32 to vector<8x1xf32>
    %20 = arith.addf %18, %19 : vector<8x1xf32>
    %21 = math.rsqrt %20 : vector<8x1xf32>
    %22 = vector.broadcast %21 : vector<8x1xf32> to vector<8x64xf32>
    %23 = arith.mulf %13, %22 : vector<8x64xf32>
    %c0_12 = arith.constant 0 : index
    %c0_13 = arith.constant 0 : index
    %24 = vector.load %arg4[%c0_12, %c0_13] : memref<1x64xf32, #tpu.memory_space<vmem>>, vector<1x64xf32>
    %25 = vector.broadcast %24 : vector<1x64xf32> to vector<8x64xf32>
    %26 = arith.mulf %23, %25 : vector<8x64xf32>
    %c0_14 = arith.constant 0 : index
    %c0_15 = arith.constant 0 : index
    %27 = vector.load %arg5[%c0_14, %c0_15] : memref<1x64xf32, #tpu.memory_space<vmem>>, vector<1x64xf32>
    %28 = vector.broadcast %27 : vector<1x64xf32> to vector<8x64xf32>
    %29 = arith.addf %26, %28 : vector<8x64xf32>
    %c0_16 = arith.constant 0 : index
    %c0_17 = arith.constant 0 : index
    %30 = vector.load %arg7[%c0_16, %c0_17] : memref<8x64xf32, #tpu.memory_space<vmem>>, vector<8x64xf32>
    tpu.vector_store %arg7[%c0_16, %c0_17], %29 {strides = array<i32>} : memref<8x64xf32, #tpu.memory_space<vmem>>, vector<8x64xf32>,
    return
  }
  func.func @transform_0(%arg0: i32) -> (i32, i32) {
    %c0_i32 = arith.constant 0 : i32
    %c0_i32_0 = arith.constant 0 : i32
    return %arg0, %c0_i32 : i32, i32
  }
  func.func @transform_1(%arg0: i32) -> (i32, i32) {
    %c0_i32 = arith.constant 0 : i32
    %c0_i32_0 = arith.constant 0 : i32
    %c0_i32_1 = arith.constant 0 : i32
    return %c0_i32, %c0_i32_0 : i32, i32
  }
  func.func @transform_2(%arg0: i32) -> (i32, i32) {
    %c0_i32 = arith.constant 0 : i32
    %c0_i32_0 = arith.constant 0 : i32
    %c0_i32_1 = arith.constant 0 : i32
    return %c0_i32, %c0_i32_0 : i32, i32
  }
  func.func @transform_3(%arg0: i32) -> (i32, i32) {
    %c0_i32 = arith.constant 0 : i32
    %c0_i32_0 = arith.constant 0 : i32
    %c0_i32_1 = arith.constant 0 : i32
    return %c0_i32, %c0_i32_0 : i32, i32
  }
  func.func @transform_4(%arg0: i32) -> (i32, i32) {
    %c0_i32 = arith.constant 0 : i32
    %c0_i32_0 = arith.constant 0 : i32
    %c0_i32_1 = arith.constant 0 : i32
    return %c0_i32, %c0_i32_0 : i32, i32
  }
  func.func @transform_5(%arg0: i32) -> (i32, i32) {
    %c0_i32 = arith.constant 0 : i32
    %c0_i32_0 = arith.constant 0 : i32
    return %arg0, %c0_i32 : i32, i32
  }
  func.func @transform_6(%arg0: i32) -> (i32, i32) {
    %c0_i32 = arith.constant 0 : i32
    %c0_i32_0 = arith.constant 0 : i32
    return %arg0, %c0_i32 : i32, i32
  }
}

</mosaic_0001>

<llo_original>
// kernel: tpu_custom_call.1
$region0: #{tpu_custom_call.1}
  #allocation0 [shape = 'u32[]', space=smem, size = 0x4, offset = 0x4, fixed_abs, tag = 'smem constant byte address 0x4 - core index']
  #allocation1 [shape = 'u32[72,128]{1,0:T(1,128)}', space=vmem, size = 0x9000, scoped, tag = 'internal scratch']
  %s0 = inlined_call_operand.hbm [shape: f32[16,32], index: 0, kind: input, shape index: {}]
  %s1 = inlined_call_operand.hbm [shape: f32[32,64], index: 1, kind: input, shape index: {}]
  %s2 = inlined_call_operand.vmem [shape: f32[1,64], index: 2, kind: input, shape index: {}]
  %s3 = inlined_call_operand.vmem [shape: f32[1,64], index: 3, kind: input, shape index: {}]
  %s4 = inlined_call_operand.vmem [shape: f32[1,64], index: 4, kind: input, shape index: {}]
  %s5 = inlined_call_operand.hbm [shape: f32[16,64], index: 5, kind: input, shape index: {}]
  %s6 = inlined_call_operand.hbm [shape: f32[16,64], index: 6, kind: output, shape index: {}]
  %s7 = sld [smem:[#allocation0]]
  $region69: #{tpu_custom_call.1} parent=0
    _
  %s9 = ssub.s32 1, %s7
  %s10 = scalar_select 0, %s9, %s7
  $region1: #{tpu_custom_call.1} parent=0
    #allocation2 [shape = 'u8[8192]{0}', space=vmem, size = 0x2000, scoped, tag = 'input window, operand 0']
    #allocation3 [shape = 's32[2]{0}', space=sflag, size = 0x8, scoped, tag = 'scoped memory for tpu_custom_call.1']
    #allocation4 [shape = 's32[2]{0}', space=sflag, size = 0x8, scoped, tag = 'scoped memory for tpu_custom_call.1']
    #allocation5 [shape = 'u8[16384]{0}', space=vmem, size = 0x4000, scoped, tag = 'input window, operand 1, single buffered']
    #allocation6 [shape = 's32[1]{0}', space=sflag, size = 0x4, scoped, tag = 'scoped memory for tpu_custom_call.1']
    #allocation7 [shape = 'u8[8192]{0}', space=vmem, size = 0x2000, scoped, tag = 'input window, operand 5']
    #allocation8 [shape = 'u8[8192]{0}', space=vmem, size = 0x2000, scoped, tag = 'output window, operand 0']
    %11 = vsyncpa [#allocation3], 0
    %s12 = scalar_lea.sflag [#allocation3], 1
    %13 = vsyncpa %s12, 0
    %14 = vsyncpa [#allocation6], 0
    %15 = vsyncpa [#allocation4], 0
    %s16 = scalar_lea.sflag [#allocation4], 1
    %17 = vsyncpa %s16, 0
    loop: start=0, step=1, limit=4
    $region2: #{tpu_custom_call.1} parent=1 // loop_pre_header
      _
    $region3: #{tpu_custom_call.1} parent=1 // loop_header
      %s19 = sphi 0, %s23
      %p20 = scmp.ge.s32.totalorder %s19, 4
      %s29 = sphi 0, %s31
      %s32 = sphi 0, %s29
      %s33 = sphi 0, %s32
      %s49 = sphi 0, %s33
      %s53 = sphi 0, %s53
      %s55 = sphi 0, %s53
      %s56 = sphi 0, %s55
      %s70 = sphi 0, %s56
      %s74 = sphi 0, %s74
      %s76 = sphi 0, %s74
      %s77 = sphi 0, %s76
      %s91 = sphi 0, %s77
      %s95 = sphi 0, %s95
      %s97 = sphi 0, %s95
      %s98 = sphi 0, %s97
      %s112 = sphi 0, %s98
      %s116 = sphi 0, %s116
      %s118 = sphi 0, %s116
      %s119 = sphi 0, %s118
      %s133 = sphi 0, %s119
      %s139 = sphi 0, %s141
      %s142 = sphi 0, %s139
      %s143 = sphi 0, %s142
      %s159 = sphi 0, %s143
      %s165 = sphi 0, %s167
      %s168 = sphi 0, %s165
      %s169 = sphi 0, %s168
      %s185 = sphi 0, %s169
    $region4: #{tpu_custom_call.1} parent=1 // loop_header_branch
      %22 = sbr.rel (%p20) target = $region8
    $region5: #{tpu_custom_call.1} parent=1 // loop_body
      %s24 = ssub.s32 %s19, 1
      %s25 = ssub.s32 %s19, 2
      %s26 = sadd.s32 %s19, 1
      %s27 = ssub.s32 %s19, %s26
      %p28 = scmp.eq.s32.totalorder %s27, 0
      %s30 = sadd.s32 %s29, 1
      %s31 = scalar_select %p28, %s29, %s30
      %p34 = pneg %p28
      %p35 = scmp.eq.s32.totalorder %s19, 1
      %p36 = por %p34, %p35
      %p37 = scmp.ne.s32.totalorder %s29, %s32
      %p38 = scmp.eq.s32.totalorder %s19, 0
      %p39 = por %p37, %p38
      %p40 = scmp.ne.s32.totalorder %s29, %s32
      %p41 = scmp.eq.s32.totalorder %s24, 1
      %p42 = por %p40, %p41
      %p43 = scmp.ne.s32.totalorder %s32, %s33
      %p44 = scmp.eq.s32.totalorder %s24, 0
      %p45 = por %p43, %p44
      %p46 = scmp.ne.s32.totalorder %s32, %s33
      %p47 = scmp.eq.s32.totalorder %s25, 1
      %p48 = por %p46, %p47
      %p50 = scmp.ne.s32.totalorder %s33, %s49
      %p51 = scmp.eq.s32.totalorder %s25, 0
      %p52 = por %p50, %p51
      %s54 = sadd.s32 %s53, 1
      %p57 = scmp.eq.s32.totalorder %s19, 1
      %p58 = scmp.ne.s32.totalorder %s53, %s55
      %p59 = scmp.eq.s32.totalorder %s19, 0
      %p60 = por %p58, %p59
      %p61 = scmp.ne.s32.totalorder %s53, %s55
      %p62 = scmp.eq.s32.totalorder %s24, 1
      %p63 = por %p61, %p62
      %p64 = scmp.ne.s32.totalorder %s55, %s56
      %p65 = scmp.eq.s32.totalorder %s24, 0
      %p66 = por %p64, %p65
      %p67 = scmp.ne.s32.totalorder %s55, %s56
      %p68 = scmp.eq.s32.totalorder %s25, 1
      %p69 = por %p67, %p68
      %p71 = scmp.ne.s32.totalorder %s56, %s70
      %p72 = scmp.eq.s32.totalorder %s25, 0
      %p73 = por %p71, %p72
      %s75 = sadd.s32 %s74, 1
      %p78 = scmp.eq.s32.totalorder %s19, 1
      %p79 = scmp.ne.s32.totalorder %s74, %s76
      %p80 = scmp.eq.s32.totalorder %s19, 0
      %p81 = por %p79, %p80
      %p82 = scmp.ne.s32.totalorder %s74, %s76
      %p83 = scmp.eq.s32.totalorder %s24, 1
      %p84 = por %p82, %p83
      %p85 = scmp.ne.s32.totalorder %s76, %s77
      %p86 = scmp.eq.s32.totalorder %s24, 0
      %p87 = por %p85, %p86
      %p88 = scmp.ne.s32.totalorder %s76, %s77
      %p89 = scmp.eq.s32.totalorder %s25, 1
      %p90 = por %p88, %p89
      %p92 = scmp.ne.s32.totalorder %s77, %s91
      %p93 = scmp.eq.s32.totalorder %s25, 0
      %p94 = por %p92, %p93
      %s96 = sadd.s32 %s95, 1
      %p99 = scmp.eq.s32.totalorder %s19, 1
      %p100 = scmp.ne.s32.totalorder %s95, %s97
      %p101 = scmp.eq.s32.totalorder %s19, 0
      %p102 = por %p100, %p101
      %p103 = scmp.ne.s32.totalorder %s95, %s97
      %p104 = scmp.eq.s32.totalorder %s24, 1
      %p105 = por %p103, %p104
      %p106 = scmp.ne.s32.totalorder %s97, %s98
      %p107 = scmp.eq.s32.totalorder %s24, 0
      %p108 = por %p106, %p107
      %p109 = scmp.ne.s32.totalorder %s97, %s98
      %p110 = scmp.eq.s32.totalorder %s25, 1
      %p111 = por %p109, %p110
      %p113 = scmp.ne.s32.totalorder %s98, %s112
      %p114 = scmp.eq.s32.totalorder %s25, 0
      %p115 = por %p113, %p114
      %s117 = sadd.s32 %s116, 1
      %p120 = scmp.eq.s32.totalorder %s19, 1
      %p121 = scmp.ne.s32.totalorder %s116, %s118
      %p122 = scmp.eq.s32.totalorder %s19, 0
      %p123 = por %p121, %p122
      %p124 = scmp.ne.s32.totalorder %s116, %s118
      %p125 = scmp.eq.s32.totalorder %s24, 1
      %p126 = por %p124, %p125
      %p127 = scmp.ne.s32.totalorder %s118, %s119
      %p128 = scmp.eq.s32.totalorder %s24, 0
      %p129 = por %p127, %p128
      %p130 = scmp.ne.s32.totalorder %s118, %s119
      %p131 = scmp.eq.s32.totalorder %s25, 1
      %p132 = por %p130, %p131
      %p134 = scmp.ne.s32.totalorder %s119, %s133
      %p135 = scmp.eq.s32.totalorder %s25, 0
      %p136 = por %p134, %p135
      %s137 = ssub.s32 %s19, %s26
      %p138 = scmp.eq.s32.totalorder %s137, 0
      %s140 = sadd.s32 %s139, 1
      %s141 = scalar_select %p138, %s139, %s140
      %p144 = pneg %p138
      %p145 = scmp.eq.s32.totalorder %s19, 1
      %p146 = por %p144, %p145
      %p147 = scmp.ne.s32.totalorder %s139, %s142
      %p148 = scmp.eq.s32.totalorder %s19, 0
      %p149 = por %p147, %p148
      %p150 = scmp.ne.s32.totalorder %s139, %s142
      %p151 = scmp.eq.s32.totalorder %s24, 1
      %p152 = por %p150, %p151
      %p153 = scmp.ne.s32.totalorder %s142, %s143
      %p154 = scmp.eq.s32.totalorder %s24, 0
      %p155 = por %p153, %p154
      %p156 = scmp.ne.s32.totalorder %s142, %s143
      %p157 = scmp.eq.s32.totalorder %s25, 1
      %p158 = por %p156, %p157
      %p160 = scmp.ne.s32.totalorder %s143, %s159
      %p161 = scmp.eq.s32.totalorder %s25, 0
      %p162 = por %p160, %p161
      %s163 = ssub.s32 %s19, %s26
      %p164 = scmp.eq.s32.totalorder %s163, 0
      %s166 = sadd.s32 %s165, 1
      %s167 = scalar_select %p164, %s165, %s166
      %p170 = pneg %p164
      %p171 = scmp.eq.s32.totalorder %s19, 1
      %p172 = por %p170, %p171
      %p173 = scmp.ne.s32.totalorder %s165, %s168
      %p174 = scmp.eq.s32.totalorder %s19, 0
      %p175 = por %p173, %p174
      %p176 = scmp.ne.s32.totalorder %s165, %s168
      %p177 = scmp.eq.s32.totalorder %s24, 1
      %p178 = por %p176, %p177
      %p179 = scmp.ne.s32.totalorder %s168, %s169
      %p180 = scmp.eq.s32.totalorder %s24, 0
      %p181 = por %p179, %p180
      %p182 = scmp.ne.s32.totalorder %s168, %s169
      %p183 = scmp.eq.s32.totalorder %s25, 1
      %p184 = por %p182, %p183
      %p186 = scmp.ne.s32.totalorder %s169, %s185
      %p187 = scmp.eq.s32.totalorder %s25, 0
      %p188 = por %p186, %p187
      %p189 = scmp.le.s32.totalorder 1, %s19
      %p190 = scmp.lt.s32.totalorder %s19, 3
      %p191 = pnand %p189, %p190
      %p192 = pneg %p191
      // Predicated region
      $region9: #{tpu_custom_call.1} parent=5 // pred_check
        _
      $region10: #{tpu_custom_call.1} parent=5 // pred_check_branch
        %194 = sbr.rel (%p191) target = $region12
      $region11: #{tpu_custom_call.1} parent=5 // pred_region
        %s195 = ssub.s32 %s19, 1
        // Predicated region
        $region13: #{tpu_custom_call.1} parent=11 // pred_check
          %p196 = pneg %p66
        $region14: #{tpu_custom_call.1} parent=11 // pred_check_branch
          %198 = sbr.rel (%p196) target = $region16
        $region15: #{tpu_custom_call.1} parent=11 // pred_region
          %200 = vsyncadd [#allocation6], 0
          %s201 = sshll.u32 %s1, 4
          %s202 = int_to_ptr.hbm [resolvable:$true] %s201
          %s203 = sshll.u32 [#allocation5], 4
          %s204 = int_to_ptr.vmem [resolvable:$true] %s203
          %209 = dma.hbm_to_vmem [thread:$0]  %s202, 512, %s204, [#allocation6], 128, 128, 8
        $region16: #{tpu_custom_call.1} parent=11 // pred_fallthru
          _
        // Predicated region
        $region17: #{tpu_custom_call.1} parent=11 // pred_check
          %p210 = pneg %p87
        $region18: #{tpu_custom_call.1} parent=11 // pred_check_branch
          %212 = sbr.rel (%p210) target = $region20
        $region19: #{tpu_custom_call.1} parent=11 // pred_region
          _
        $region20: #{tpu_custom_call.1} parent=11 // pred_fallthru
          _
        // Predicated region
        $region21: #{tpu_custom_call.1} parent=11 // pred_check
          %p213 = pneg %p108
        $region22: #{tpu_custom_call.1} parent=11 // pred_check_branch
          %215 = sbr.rel (%p213) target = $region24
        $region23: #{tpu_custom_call.1} parent=11 // pred_region
          _
        $region24: #{tpu_custom_call.1} parent=11 // pred_fallthru
          _
        // Predicated region
        $region25: #{tpu_custom_call.1} parent=11 // pred_check
          %p216 = pneg %p129
        $region26: #{tpu_custom_call.1} parent=11 // pred_check_branch
          %218 = sbr.rel (%p216) target = $region28
        $region27: #{tpu_custom_call.1} parent=11 // pred_region
          _
        $region28: #{tpu_custom_call.1} parent=11 // pred_fallthru
          _
      $region12: #{tpu_custom_call.1} parent=5 // pred_fallthru
        _
      %p219 = scmp.lt.s32.totalorder %s19, 2
      // Predicated region
      $region29: #{tpu_custom_call.1} parent=5 // pred_check
        %p220 = pneg %p219
      $region30: #{tpu_custom_call.1} parent=5 // pred_check_branch
        %222 = sbr.rel (%p220) target = $region32
      $region31: #{tpu_custom_call.1} parent=5 // pred_region
        // Predicated region
        $region33: #{tpu_custom_call.1} parent=31 // pred_check
          %p223 = pneg %p39
        $region34: #{tpu_custom_call.1} parent=31 // pred_check_branch
          %225 = sbr.rel (%p223) target = $region36
        $region35: #{tpu_custom_call.1} parent=31 // pred_region
          %s226 = sand.u32 %s19, 1
          %s227 = scalar_lea.sflag [#allocation3], %s226
          %s228 = sand.u32 %s29, 1
          %s229 = smul.addr %s228, 8
          %s230 = scalar_lea.vmem [#allocation2], %s229
          %232 = vsyncadd %s227, 0
          %s233 = smul.addr %s19, 8
          %s234 = scalar_lea.hbm %s0, %s233
          %s236 = sshll.u32 %s234, 4
          %s237 = int_to_ptr.hbm [resolvable:$true] %s236
          %s238 = sshll.u32 %s230, 4
          %s239 = int_to_ptr.vmem [resolvable:$true] %s238
          %241 = dma.hbm_to_vmem [thread:$0]  %s237, 128, %s239, %s227
        $region36: #{tpu_custom_call.1} parent=31 // pred_fallthru
          _
        // Predicated region
        $region37: #{tpu_custom_call.1} parent=31 // pred_check
          %p242 = pneg %p149
        $region38: #{tpu_custom_call.1} parent=31 // pred_check_branch
          %244 = sbr.rel (%p242) target = $region40
        $region39: #{tpu_custom_call.1} parent=31 // pred_region
          %s245 = sand.u32 %s19, 1
          %s246 = scalar_lea.sflag [#allocation3], %s245
          %s247 = sand.u32 %s139, 1
          %s248 = smul.addr %s247, 8
          %s249 = scalar_lea.vmem [#allocation7], %s248
          %251 = vsyncadd %s246, 0
          %s252 = smul.addr %s19, 8
          %s253 = scalar_lea.hbm %s5, %s252
          %s255 = sshll.u32 %s253, 4
          %s256 = int_to_ptr.hbm [resolvable:$true] %s255
          %s257 = sshll.u32 %s249, 4
          %s258 = int_to_ptr.vmem [resolvable:$true] %s257
          %260 = dma.hbm_to_vmem [thread:$0]  %s256, 128, %s258, %s246
        $region40: #{tpu_custom_call.1} parent=31 // pred_fallthru
          _
      $region32: #{tpu_custom_call.1} parent=5 // pred_fallthru
        _
      %p261 = scmp.le.s32.totalorder 1, %s19
      %p262 = scmp.lt.s32.totalorder %s19, 3
      %p263 = pnand %p261, %p262
      %p264 = pneg %p263
      // Predicated region
      $region41: #{tpu_custom_call.1} parent=5 // pred_check
        _
      $region42: #{tpu_custom_call.1} parent=5 // pred_check_branch
        %266 = sbr.rel (%p263) target = $region44
      $region43: #{tpu_custom_call.1} parent=5 // pred_region
        %s267 = ssub.s32 %s19, 1
        %s268 = sand.u32 %s24, 1
        %s269 = scalar_lea.sflag [#allocation3], %s268
        %s270 = sand.u32 %s32, 1
        %s271 = smul.addr %s270, 8
        %s272 = scalar_lea.vmem [#allocation2], %s271
        // Predicated region
        $region45: #{tpu_custom_call.1} parent=43 // pred_check
          %p273 = pneg %p45
        $region46: #{tpu_custom_call.1} parent=43 // pred_check_branch
          %275 = sbr.rel (%p273) target = $region48
        $region47: #{tpu_custom_call.1} parent=43 // pred_region
          %277 = dma.done %s269, 128
        $region48: #{tpu_custom_call.1} parent=43 // pred_fallthru
          _
        // Predicated region
        $region49: #{tpu_custom_call.1} parent=43 // pred_check
          %p278 = pneg %p66
        $region50: #{tpu_custom_call.1} parent=43 // pred_check_branch
          %280 = sbr.rel (%p278) target = $region52
        $region51: #{tpu_custom_call.1} parent=43 // pred_region
          %282 = dma.done [#allocation6], 512
        $region52: #{tpu_custom_call.1} parent=43 // pred_fallthru
          _
        %s283 = sand.u32 %s24, 1
        %s284 = scalar_lea.sflag [#allocation3], %s283
        %s285 = sand.u32 %s142, 1
        %s286 = smul.addr %s285, 8
        %s287 = scalar_lea.vmem [#allocation7], %s286
        // Predicated region
        $region53: #{tpu_custom_call.1} parent=43 // pred_check
          %p288 = pneg %p155
        $region54: #{tpu_custom_call.1} parent=43 // pred_check_branch
          %290 = sbr.rel (%p288) target = $region56
        $region55: #{tpu_custom_call.1} parent=43 // pred_region
          %292 = dma.done %s284, 128
        $region56: #{tpu_custom_call.1} parent=43 // pred_fallthru
          _
        %s293 = sand.u32 %s24, 1
        %s294 = scalar_lea.sflag [#allocation3], %s293
        %s295 = sand.u32 %s32, 1
        %s296 = smul.addr %s295, 8
        %s297 = scalar_lea.vmem [#allocation2], %s296
        %p298 = pneg %p45
        %p299 = pneg %p42
        %p300 = pneg %p66
        %p301 = pneg %p63
        %p302 = pneg %p87
        %p303 = pneg %p84
        %p304 = pneg %p108
        %p305 = pneg %p105
        %p306 = pneg %p129
        %p307 = pneg %p126
        %s308 = sand.u32 %s24, 1
        %s309 = scalar_lea.sflag [#allocation3], %s308
        %s310 = sand.u32 %s142, 1
        %s311 = smul.addr %s310, 8
        %s312 = scalar_lea.vmem [#allocation7], %s311
        %p313 = pneg %p155
        %p314 = pneg %p152
        %p315 = pneg %p181
        %p316 = pneg %p178
        %s317 = sand.u32 %s168, 1
        %s318 = scalar_lea.sflag [#allocation4], %s317
        %s319 = sand.u32 %s168, 1
        %s320 = smul.addr %s319, 8
        %s321 = scalar_lea.vmem [#allocation8], %s320
        %v322 = vld [vmem:[%s272] sm:$0xff]
        %v323 = vld [vmem:[#allocation5] sm:$0xff]
        %v324 = vld [vmem:[#allocation5 + $0x8] sm:$0xff]
        %v325 = vld [vmem:[#allocation5 + $0x10] sm:$0xff]
        %v326 = vld [vmem:[#allocation5 + $0x18] sm:$0xff]
        %v327 = vld [vmem:[%s2] sm:$0x1]
        %v329 = vperm.slane %v327, 0
        %vm331 = vcmask 261120
        %v333 = vsel %vm331, %v322, 0
        %335 = vmatpush.msra.mxu0 0.0
        %336 = vmatpush.msra.mxu0 0.0
        %337 = vmatpush.msra.mxu0 0.0
        %338 = vmatpush.msra.mxu0 0.0
        %339 = vmatpush.msra.mxu0 0.0
        %340 = vmatpush.msra.mxu0 0.0
        %341 = vmatpush.msra.mxu0 0.0
        %342 = vmatpush.msra.mxu0 0.0
        %343 = vmatpush.msra.mxu0 0.0
        %344 = vmatpush.msra.mxu0 0.0
        %345 = vmatpush.msra.mxu0 0.0
        %346 = vmatpush.msra.mxu0 0.0
        %347 = vmatpush.msra.mxu0 %v326
        %348 = vmatpush.msra.mxu0 %v325
        %349 = vmatpush.msra.mxu0 %v324
        %350 = vmatpush.msra.mxu0 %v323
        %351 = vmatmul.f32.gmra.mxu0 %v333
        %v352 = vpop.f32.mrf.mxu0
        %v353 = vadd.f32 %v329, %v352
        %354 = vdwg.mxu0
        %v355 = vld [vmem:[%s287] sm:$0xff]
        %v356 = vadd.f32 %v353, %v355
        %vm357 = vcmask 523264
        %v358 = vsel %vm357, %v356, 0.0
        %359 = vadd.xlane.f32.xlu0 %v358
        %v360 = vpop.xlane.xlu0 %359
        %v361 = vrcp.pop 64.0
        %v362 = vmul.f32 64.0, %v361
        %v363 = vsub.f32 1.0, %v362
        %v364 = vmul.f32 %v361, %v363
        %v365 = vadd.f32 %v361, %v364
        %vm366 = vweird.f32 %v361
        %v367 = vsel %vm366, %v361, %v365
        %v368 = vmul.f32 %v360, %v367
        %v369 = vsub.f32 %v356, %v368
        %v370 = vmul.f32 %v369, %v369
        %v371 = vsel %vm357, %v370, 0.0
        %372 = vadd.xlane.f32.xlu0 %v371
        %v373 = vpop.xlane.xlu0 %372
        %v374 = vmul.f32 %v373, %v367
        %v375 = vadd.f32 %v374, 1e-12
        %v376 = vrsqrt.pop %v375
        %v377 = vmul.f32 %v376, %v375
        %v378 = vmul.f32 %v377, %v376
        %v379 = vmul.f32 0.5, %v378
        %v380 = vsub.f32 1.5, %v379
        %v381 = vmul.f32 %v376, %v380
        %vm382 = vweird.f32 %v375
        %vm383 = vweird.f32 %v376
        %vm384 = vmor %vm382, %vm383
        %v385 = vsel %vm384, %v376, %v381
        %v386 = vmul.f32 %v369, %v385
        %v387 = vld [vmem:[%s3] sm:$0x1]
        %v389 = vperm.slane %v387, 0
        %v391 = vmul.f32 %v386, %v389
        %v392 = vld [vmem:[%s4] sm:$0x1]
        %v394 = vperm.slane %v392, 0
        %v396 = vadd.f32 %v391, %v394
        %397 = vst.msk [vmem:[%s321] sm:$0xff] %vm357, %v396
        %s398 = sand.u32 %s168, 1
        %s399 = scalar_lea.sflag [#allocation4], %s398
        %s400 = sand.u32 %s168, 1
        %s401 = smul.addr %s400, 8
        %s402 = scalar_lea.vmem [#allocation8], %s401
        // Predicated region
        $region57: #{tpu_custom_call.1} parent=43 // pred_check
          %p403 = pneg %p178
        $region58: #{tpu_custom_call.1} parent=43 // pred_check_branch
          %405 = sbr.rel (%p403) target = $region60
        $region59: #{tpu_custom_call.1} parent=43 // pred_region
          %407 = vsyncadd %s399, 0
          %s408 = smul.addr %s24, 8
          %s409 = scalar_lea.hbm %s6, %s408
          %s411 = sshll.u32 %s402, 4
          %s412 = int_to_ptr.vmem [resolvable:$true] %s411
          %s413 = sshll.u32 %s409, 4
          %s414 = int_to_ptr.hbm [resolvable:$true] %s413
          %416 = dma.vmem_to_hbm [thread:$0]  %s412, 128, %s414, %s399
        $region60: #{tpu_custom_call.1} parent=43 // pred_fallthru
          _
      $region44: #{tpu_custom_call.1} parent=5 // pred_fallthru
        _
      %p417 = scmp.le.s32.totalorder 2, %s19
      // Predicated region
      $region61: #{tpu_custom_call.1} parent=5 // pred_check
        %p418 = pneg %p417
      $region62: #{tpu_custom_call.1} parent=5 // pred_check_branch
        %420 = sbr.rel (%p418) target = $region64
      $region63: #{tpu_custom_call.1} parent=5 // pred_region
        %s421 = ssub.s32 %s19, 2
        // Predicated region
        $region65: #{tpu_custom_call.1} parent=63 // pred_check
          %p422 = pneg %p184
        $region66: #{tpu_custom_call.1} parent=63 // pred_check_branch
          %424 = sbr.rel (%p422) target = $region68
        $region67: #{tpu_custom_call.1} parent=63 // pred_region
          %s425 = sand.u32 %s169, 1
          %s426 = scalar_lea.sflag [#allocation4], %s425
          %s427 = sand.u32 %s169, 1
          %s428 = smul.addr %s427, 8
          %s429 = scalar_lea.vmem [#allocation8], %s428
          %431 = dma.done %s426, 128
        $region68: #{tpu_custom_call.1} parent=63 // pred_fallthru
          _
      $region64: #{tpu_custom_call.1} parent=5 // pred_fallthru
        _
    $region6: #{tpu_custom_call.1} parent=1 // loop_footer
      %s23 = sadd.s32 1, %s19
    $region7: #{tpu_custom_call.1} parent=1 // loop_footer_branch
      %18 = sbr.rel target = $region3
    $region8: #{tpu_custom_call.1} parent=1 // loop_exit
      _
    %432 = vsyncpa [#allocation3], 1
    %s433 = scalar_lea.sflag [#allocation3], 1
    %434 = vsyncpa %s433, 1
    %435 = vsyncpa [#allocation6], 1
    %436 = vsyncpa [#allocation4], 1
    %s437 = scalar_lea.sflag [#allocation4], 1
    %438 = vsyncpa %s437, 1

// kernel: tpu_custom_call.1
$region0: #{tpu_custom_call.1}
  #allocation0 [shape = 'u32[]', space=smem, size = 0x4, offset = 0x4, fixed_abs, tag = 'smem constant byte address 0x4 - core index']
  #allocation1 [shape = 'u32[72,128]{1,0:T(1,128)}', space=vmem, size = 0x9000, scoped, tag = 'internal scratch']
  %s0 = inlined_call_operand.hbm [shape: f32[16,32], index: 0, kind: input, shape index: {}]
  %s1 = inlined_call_operand.hbm [shape: f32[32,64], index: 1, kind: input, shape index: {}]
  %s2 = inlined_call_operand.vmem [shape: f32[1,64], index: 2, kind: input, shape index: {}]
  %s3 = inlined_call_operand.vmem [shape: f32[1,64], index: 3, kind: input, shape index: {}]
  %s4 = inlined_call_operand.vmem [shape: f32[1,64], index: 4, kind: input, shape index: {}]
  %s5 = inlined_call_operand.hbm [shape: f32[16,64], index: 5, kind: input, shape index: {}]
  %s6 = inlined_call_operand.hbm [shape: f32[16,64], index: 6, kind: output, shape index: {}]
  %s7 = sld [smem:[#allocation0]]
  $region69: #{tpu_custom_call.1} parent=0
    _
  %s9 = ssub.s32 1, %s7
  %s10 = scalar_select 0, %s9, %s7
  $region1: #{tpu_custom_call.1} parent=0
    #allocation2 [shape = 'u8[8192]{0}', space=vmem, size = 0x2000, scoped, tag = 'input window, operand 0']
    #allocation3 [shape = 's32[2]{0}', space=sflag, size = 0x8, scoped, tag = 'scoped memory for tpu_custom_call.1']
    #allocation4 [shape = 's32[2]{0}', space=sflag, size = 0x8, scoped, tag = 'scoped memory for tpu_custom_call.1']
    #allocation5 [shape = 'u8[16384]{0}', space=vmem, size = 0x4000, scoped, tag = 'input window, operand 1, single buffered']
    #allocation6 [shape = 's32[1]{0}', space=sflag, size = 0x4, scoped, tag = 'scoped memory for tpu_custom_call.1']
    #allocation7 [shape = 'u8[8192]{0}', space=vmem, size = 0x2000, scoped, tag = 'input window, operand 5']
    #allocation8 [shape = 'u8[8192]{0}', space=vmem, size = 0x2000, scoped, tag = 'output window, operand 0']
    %11 = vsyncpa [#allocation3], 0
    %s12 = scalar_lea.sflag [#allocation3], 1
    %13 = vsyncpa %s12, 0
    %14 = vsyncpa [#allocation6], 0
    %15 = vsyncpa [#allocation4], 0
    %s16 = scalar_lea.sflag [#allocation4], 1
    %17 = vsyncpa %s16, 0
    loop: start=0, step=1, limit=4
    $region2: #{tpu_custom_call.1} parent=1 // loop_pre_header
      _
    $region3: #{tpu_custom_call.1} parent=1 // loop_header
      %s19 = sphi 0, %s23
      %p20 = scmp.ge.s32.totalorder %s19, 4
      %s29 = sphi 0, %s31
      %s32 = sphi 0, %s29
      %s33 = sphi 0, %s32
      %s49 = sphi 0, %s33
      %s53 = sphi 0, %s53
      %s55 = sphi 0, %s53
      %s56 = sphi 0, %s55
      %s70 = sphi 0, %s56
      %s74 = sphi 0, %s74
      %s76 = sphi 0, %s74
      %s77 = sphi 0, %s76
      %s91 = sphi 0, %s77
      %s95 = sphi 0, %s95
      %s97 = sphi 0, %s95
      %s98 = sphi 0, %s97
      %s112 = sphi 0, %s98
      %s116 = sphi 0, %s116
      %s118 = sphi 0, %s116
      %s119 = sphi 0, %s118
      %s133 = sphi 0, %s119
      %s139 = sphi 0, %s141
      %s142 = sphi 0, %s139
      %s143 = sphi 0, %s142
      %s159 = sphi 0, %s143
      %s165 = sphi 0, %s167
      %s168 = sphi 0, %s165
      %s169 = sphi 0, %s168
      %s185 = sphi 0, %s169
    $region4: #{tpu_custom_call.1} parent=1 // loop_header_branch
      %22 = sbr.rel (%p20) target = $region8
    $region5: #{tpu_custom_call.1} parent=1 // loop_body
      %s24 = ssub.s32 %s19, 1
      %s25 = ssub.s32 %s19, 2
      %s26 = sadd.s32 %s19, 1
      %s27 = ssub.s32 %s19, %s26
      %p28 = scmp.eq.s32.totalorder %s27, 0
      %s30 = sadd.s32 %s29, 1
      %s31 = scalar_select %p28, %s29, %s30
      %p34 = pneg %p28
      %p35 = scmp.eq.s32.totalorder %s19, 1
      %p36 = por %p34, %p35
      %p37 = scmp.ne.s32.totalorder %s29, %s32
      %p38 = scmp.eq.s32.totalorder %s19, 0
      %p39 = por %p37, %p38
      %p40 = scmp.ne.s32.totalorder %s29, %s32
      %p41 = scmp.eq.s32.totalorder %s24, 1
      %p42 = por %p40, %p41
      %p43 = scmp.ne.s32.totalorder %s32, %s33
      %p44 = scmp.eq.s32.totalorder %s24, 0
      %p45 = por %p43, %p44
      %p46 = scmp.ne.s32.totalorder %s32, %s33
      %p47 = scmp.eq.s32.totalorder %s25, 1
      %p48 = por %p46, %p47
      %p50 = scmp.ne.s32.totalorder %s33, %s49
      %p51 = scmp.eq.s32.totalorder %s25, 0
      %p52 = por %p50, %p51
      %s54 = sadd.s32 %s53, 1
      %p57 = scmp.eq.s32.totalorder %s19, 1
      %p58 = scmp.ne.s32.totalorder %s53, %s55
      %p59 = scmp.eq.s32.totalorder %s19, 0
      %p60 = por %p58, %p59
      %p61 = scmp.ne.s32.totalorder %s53, %s55
      %p62 = scmp.eq.s32.totalorder %s24, 1
      %p63 = por %p61, %p62
      %p64 = scmp.ne.s32.totalorder %s55, %s56
      %p65 = scmp.eq.s32.totalorder %s24, 0
      %p66 = por %p64, %p65
      %p67 = scmp.ne.s32.totalorder %s55, %s56
      %p68 = scmp.eq.s32.totalorder %s25, 1
      %p69 = por %p67, %p68
      %p71 = scmp.ne.s32.totalorder %s56, %s70
      %p72 = scmp.eq.s32.totalorder %s25, 0
      %p73 = por %p71, %p72
      %s75 = sadd.s32 %s74, 1
      %p78 = scmp.eq.s32.totalorder %s19, 1
      %p79 = scmp.ne.s32.totalorder %s74, %s76
      %p80 = scmp.eq.s32.totalorder %s19, 0
      %p81 = por %p79, %p80
      %p82 = scmp.ne.s32.totalorder %s74, %s76
      %p83 = scmp.eq.s32.totalorder %s24, 1
      %p84 = por %p82, %p83
      %p85 = scmp.ne.s32.totalorder %s76, %s77
      %p86 = scmp.eq.s32.totalorder %s24, 0
      %p87 = por %p85, %p86
      %p88 = scmp.ne.s32.totalorder %s76, %s77
      %p89 = scmp.eq.s32.totalorder %s25, 1
      %p90 = por %p88, %p89
      %p92 = scmp.ne.s32.totalorder %s77, %s91
      %p93 = scmp.eq.s32.totalorder %s25, 0
      %p94 = por %p92, %p93
      %s96 = sadd.s32 %s95, 1
      %p99 = scmp.eq.s32.totalorder %s19, 1
      %p100 = scmp.ne.s32.totalorder %s95, %s97
      %p101 = scmp.eq.s32.totalorder %s19, 0
      %p102 = por %p100, %p101
      %p103 = scmp.ne.s32.totalorder %s95, %s97
      %p104 = scmp.eq.s32.totalorder %s24, 1
      %p105 = por %p103, %p104
      %p106 = scmp.ne.s32.totalorder %s97, %s98
      %p107 = scmp.eq.s32.totalorder %s24, 0
      %p108 = por %p106, %p107
      %p109 = scmp.ne.s32.totalorder %s97, %s98
      %p110 = scmp.eq.s32.totalorder %s25, 1
      %p111 = por %p109, %p110
      %p113 = scmp.ne.s32.totalorder %s98, %s112
      %p114 = scmp.eq.s32.totalorder %s25, 0
      %p115 = por %p113, %p114
      %s117 = sadd.s32 %s116, 1
      %p120 = scmp.eq.s32.totalorder %s19, 1
      %p121 = scmp.ne.s32.totalorder %s116, %s118
      %p122 = scmp.eq.s32.totalorder %s19, 0
      %p123 = por %p121, %p122
      %p124 = scmp.ne.s32.totalorder %s116, %s118
      %p125 = scmp.eq.s32.totalorder %s24, 1
      %p126 = por %p124, %p125
      %p127 = scmp.ne.s32.totalorder %s118, %s119
      %p128 = scmp.eq.s32.totalorder %s24, 0
      %p129 = por %p127, %p128
      %p130 = scmp.ne.s32.totalorder %s118, %s119
      %p131 = scmp.eq.s32.totalorder %s25, 1
      %p132 = por %p130, %p131
      %p134 = scmp.ne.s32.totalorder %s119, %s133
      %p135 = scmp.eq.s32.totalorder %s25, 0
      %p136 = por %p134, %p135
      %s137 = ssub.s32 %s19, %s26
      %p138 = scmp.eq.s32.totalorder %s137, 0
      %s140 = sadd.s32 %s139, 1
      %s141 = scalar_select %p138, %s139, %s140
      %p144 = pneg %p138
      %p145 = scmp.eq.s32.totalorder %s19, 1
      %p146 = por %p144, %p145
      %p147 = scmp.ne.s32.totalorder %s139, %s142
      %p148 = scmp.eq.s32.totalorder %s19, 0
      %p149 = por %p147, %p148
      %p150 = scmp.ne.s32.totalorder %s139, %s142
      %p151 = scmp.eq.s32.totalorder %s24, 1
      %p152 = por %p150, %p151
      %p153 = scmp.ne.s32.totalorder %s142, %s143
      %p154 = scmp.eq.s32.totalorder %s24, 0
      %p155 = por %p153, %p154
      %p156 = scmp.ne.s32.totalorder %s142, %s143
      %p157 = scmp.eq.s32.totalorder %s25, 1
      %p158 = por %p156, %p157
      %p160 = scmp.ne.s32.totalorder %s143, %s159
      %p161 = scmp.eq.s32.totalorder %s25, 0
      %p162 = por %p160, %p161
      %s163 = ssub.s32 %s19, %s26
      %p164 = scmp.eq.s32.totalorder %s163, 0
      %s166 = sadd.s32 %s165, 1
      %s167 = scalar_select %p164, %s165, %s166
      %p170 = pneg %p164
      %p171 = scmp.eq.s32.totalorder %s19, 1
      %p172 = por %p170, %p171
      %p173 = scmp.ne.s32.totalorder %s165, %s168
      %p174 = scmp.eq.s32.totalorder %s19, 0
      %p175 = por %p173, %p174
      %p176 = scmp.ne.s32.totalorder %s165, %s168
      %p177 = scmp.eq.s32.totalorder %s24, 1
      %p178 = por %p176, %p177
      %p179 = scmp.ne.s32.totalorder %s168, %s169
      %p180 = scmp.eq.s32.totalorder %s24, 0
      %p181 = por %p179, %p180
      %p182 = scmp.ne.s32.totalorder %s168, %s169
      %p183 = scmp.eq.s32.totalorder %s25, 1
      %p184 = por %p182, %p183
      %p186 = scmp.ne.s32.totalorder %s169, %s185
      %p187 = scmp.eq.s32.totalorder %s25, 0
      %p188 = por %p186, %p187
      %p189 = scmp.le.s32.totalorder 1, %s19
      %p190 = scmp.lt.s32.totalorder %s19, 3
      %p191 = pnand %p189, %p190
      %p192 = pneg %p191
      // Predicated region
      $region9: #{tpu_custom_call.1} parent=5 // pred_check
        _
      $region10: #{tpu_custom_call.1} parent=5 // pred_check_branch
        %194 = sbr.rel (%p191) target = $region12
      $region11: #{tpu_custom_call.1} parent=5 // pred_region
        %s195 = ssub.s32 %s19, 1
        // Predicated region
        $region13: #{tpu_custom_call.1} parent=11 // pred_check
          %p196 = pneg %p66
        $region14: #{tpu_custom_call.1} parent=11 // pred_check_branch
          %198 = sbr.rel (%p196) target = $region16
        $region15: #{tpu_custom_call.1} parent=11 // pred_region
          %200 = vsyncadd [#allocation6], 0
          %s201 = sshll.u32 %s1, 4
          %s202 = int_to_ptr.hbm [resolvable:$true] %s201
          %s203 = sshll.u32 [#allocation5], 4
          %s204 = int_to_ptr.vmem [resolvable:$true] %s203
          %209 = dma.hbm_to_vmem [thread:$0]  %s202, 512, %s204, [#allocation6], 128, 128, 8
        $region16: #{tpu_custom_call.1} parent=11 // pred_fallthru
          _
        // Predicated region
        $region17: #{tpu_custom_call.1} parent=11 // pred_check
          %p210 = pneg %p87
        $region18: #{tpu_custom_call.1} parent=11 // pred_check_branch
          %212 = sbr.rel (%p210) target = $region20
        $region19: #{tpu_custom_call.1} parent=11 // pred_region
          _
        $region20: #{tpu_custom_call.1} parent=11 // pred_fallthru
          _
        // Predicated region
        $region21: #{tpu_custom_call.1} parent=11 // pred_check
          %p213 = pneg %p108
        $region22: #{tpu_custom_call.1} parent=11 // pred_check_branch
          %215 = sbr.rel (%p213) target = $region24
        $region23: #{tpu_custom_call.1} parent=11 // pred_region
          _
        $region24: #{tpu_custom_call.1} parent=11 // pred_fallthru
          _
        // Predicated region
        $region25: #{tpu_custom_call.1} parent=11 // pred_check
          %p216 = pneg %p129
        $region26: #{tpu_custom_call.1} parent=11 // pred_check_branch
          %218 = sbr.rel (%p216) target = $region28
        $region27: #{tpu_custom_call.1} parent=11 // pred_region
          _
        $region28: #{tpu_custom_call.1} parent=11 // pred_fallthru
          _
      $region12: #{tpu_custom_call.1} parent=5 // pred_fallthru
        _
      %p219 = scmp.lt.s32.totalorder %s19, 2
      // Predicated region
      $region29: #{tpu_custom_call.1} parent=5 // pred_check
        %p220 = pneg %p219
      $region30: #{tpu_custom_call.1} parent=5 // pred_check_branch
        %222 = sbr.rel (%p220) target = $region32
      $region31: #{tpu_custom_call.1} parent=5 // pred_region
        // Predicated region
        $region33: #{tpu_custom_call.1} parent=31 // pred_check
          %p223 = pneg %p39
        $region34: #{tpu_custom_call.1} parent=31 // pred_check_branch
          %225 = sbr.rel (%p223) target = $region36
        $region35: #{tpu_custom_call.1} parent=31 // pred_region
          %s226 = sand.u32 %s19, 1
          %s227 = scalar_lea.sflag [#allocation3], %s226
          %s228 = sand.u32 %s29, 1
          %s229 = smul.addr %s228, 8
          %s230 = scalar_lea.vmem [#allocation2], %s229
          %232 = vsyncadd %s227, 0
          %s233 = smul.addr %s19, 8
          %s234 = scalar_lea.hbm %s0, %s233
          %s236 = sshll.u32 %s234, 4
          %s237 = int_to_ptr.hbm [resolvable:$true] %s236
          %s238 = sshll.u32 %s230, 4
          %s239 = int_to_ptr.vmem [resolvable:$true] %s238
          %241 = dma.hbm_to_vmem [thread:$0]  %s237, 128, %s239, %s227
        $region36: #{tpu_custom_call.1} parent=31 // pred_fallthru
          _
        // Predicated region
        $region37: #{tpu_custom_call.1} parent=31 // pred_check
          %p242 = pneg %p149
        $region38: #{tpu_custom_call.1} parent=31 // pred_check_branch
          %244 = sbr.rel (%p242) target = $region40
        $region39: #{tpu_custom_call.1} parent=31 // pred_region
          %s245 = sand.u32 %s19, 1
          %s246 = scalar_lea.sflag [#allocation3], %s245
          %s247 = sand.u32 %s139, 1
          %s248 = smul.addr %s247, 8
          %s249 = scalar_lea.vmem [#allocation7], %s248
          %251 = vsyncadd %s246, 0
          %s252 = smul.addr %s19, 8
          %s253 = scalar_lea.hbm %s5, %s252
          %s255 = sshll.u32 %s253, 4
          %s256 = int_to_ptr.hbm [resolvable:$true] %s255
          %s257 = sshll.u32 %s249, 4
          %s258 = int_to_ptr.vmem [resolvable:$true] %s257
          %260 = dma.hbm_to_vmem [thread:$0]  %s256, 128, %s258, %s246
        $region40: #{tpu_custom_call.1} parent=31 // pred_fallthru
          _
      $region32: #{tpu_custom_call.1} parent=5 // pred_fallthru
        _
      %p261 = scmp.le.s32.totalorder 1, %s19
      %p262 = scmp.lt.s32.totalorder %s19, 3
      %p263 = pnand %p261, %p262
      %p264 = pneg %p263
      // Predicated region
      $region41: #{tpu_custom_call.1} parent=5 // pred_check
        _
      $region42: #{tpu_custom_call.1} parent=5 // pred_check_branch
        %266 = sbr.rel (%p263) target = $region44
      $region43: #{tpu_custom_call.1} parent=5 // pred_region
        %s267 = ssub.s32 %s19, 1
        %s268 = sand.u32 %s24, 1
        %s269 = scalar_lea.sflag [#allocation3], %s268
        %s270 = sand.u32 %s32, 1
        %s271 = smul.addr %s270, 8
        %s272 = scalar_lea.vmem [#allocation2], %s271
        // Predicated region
        $region45: #{tpu_custom_call.1} parent=43 // pred_check
          %p273 = pneg %p45
        $region46: #{tpu_custom_call.1} parent=43 // pred_check_branch
          %275 = sbr.rel (%p273) target = $region48
        $region47: #{tpu_custom_call.1} parent=43 // pred_region
          %277 = dma.done %s269, 128
        $region48: #{tpu_custom_call.1} parent=43 // pred_fallthru
          _
        // Predicated region
        $region49: #{tpu_custom_call.1} parent=43 // pred_check
          %p278 = pneg %p66
        $region50: #{tpu_custom_call.1} parent=43 // pred_check_branch
          %280 = sbr.rel (%p278) target = $region52
        $region51: #{tpu_custom_call.1} parent=43 // pred_region
          %282 = dma.done [#allocation6], 512
        $region52: #{tpu_custom_call.1} parent=43 // pred_fallthru
          _
        %s283 = sand.u32 %s24, 1
        %s284 = scalar_lea.sflag [#allocation3], %s283
        %s285 = sand.u32 %s142, 1
        %s286 = smul.addr %s285, 8
        %s287 = scalar_lea.vmem [#allocation7], %s286
        // Predicated region
        $region53: #{tpu_custom_call.1} parent=43 // pred_check
          %p288 = pneg %p155
        $region54: #{tpu_custom_call.1} parent=43 // pred_check_branch
          %290 = sbr.rel (%p288) target = $region56
        $region55: #{tpu_custom_call.1} parent=43 // pred_region
          %292 = dma.done %s284, 128
        $region56: #{tpu_custom_call.1} parent=43 // pred_fallthru
          _
        %s293 = sand.u32 %s24, 1
        %s294 = scalar_lea.sflag [#allocation3], %s293
        %s295 = sand.u32 %s32, 1
        %s296 = smul.addr %s295, 8
        %s297 = scalar_lea.vmem [#allocation2], %s296
        %p298 = pneg %p45
        %p299 = pneg %p42
        %p300 = pneg %p66
        %p301 = pneg %p63
        %p302 = pneg %p87
        %p303 = pneg %p84
        %p304 = pneg %p108
        %p305 = pneg %p105
        %p306 = pneg %p129
        %p307 = pneg %p126
        %s308 = sand.u32 %s24, 1
        %s309 = scalar_lea.sflag [#allocation3], %s308
        %s310 = sand.u32 %s142, 1
        %s311 = smul.addr %s310, 8
        %s312 = scalar_lea.vmem [#allocation7], %s311
        %p313 = pneg %p155
        %p314 = pneg %p152
        %p315 = pneg %p181
        %p316 = pneg %p178
        %s317 = sand.u32 %s168, 1
        %s318 = scalar_lea.sflag [#allocation4], %s317
        %s319 = sand.u32 %s168, 1
        %s320 = smul.addr %s319, 8
        %s321 = scalar_lea.vmem [#allocation8], %s320
        %v322 = vld [vmem:[%s272] sm:$0xff]
        %v323 = vld [vmem:[#allocation5] sm:$0xff]
        %v324 = vld [vmem:[#allocation5 + $0x8] sm:$0xff]
        %v325 = vld [vmem:[#allocation5 + $0x10] sm:$0xff]
        %v326 = vld [vmem:[#allocation5 + $0x18] sm:$0xff]
        %v327 = vld [vmem:[%s2] sm:$0x1]
        %v329 = vperm.slane %v327, 0
        %vm331 = vcmask 261120
        %v333 = vsel %vm331, %v322, 0
        %335 = vmatpush.msra.mxu0 0.0
        %336 = vmatpush.msra.mxu0 0.0
        %337 = vmatpush.msra.mxu0 0.0
        %338 = vmatpush.msra.mxu0 0.0
        %339 = vmatpush.msra.mxu0 0.0
        %340 = vmatpush.msra.mxu0 0.0
        %341 = vmatpush.msra.mxu0 0.0
        %342 = vmatpush.msra.mxu0 0.0
        %343 = vmatpush.msra.mxu0 0.0
        %344 = vmatpush.msra.mxu0 0.0
        %345 = vmatpush.msra.mxu0 0.0
        %346 = vmatpush.msra.mxu0 0.0
        %347 = vmatpush.msra.mxu0 %v326
        %348 = vmatpush.msra.mxu0 %v325
        %349 = vmatpush.msra.mxu0 %v324
        %350 = vmatpush.msra.mxu0 %v323
        %351 = vmatmul.f32.gmra.mxu0 %v333
        %v352 = vpop.f32.mrf.mxu0
        %v353 = vadd.f32 %v329, %v352
        %354 = vdwg.mxu0
        %v355 = vld [vmem:[%s287] sm:$0xff]
        %v356 = vadd.f32 %v353, %v355
        %vm357 = vcmask 523264
        %v358 = vsel %vm357, %v356, 0.0
        %359 = vadd.xlane.f32.xlu0 %v358
        %v360 = vpop.xlane.xlu0 %359
        %v361 = vrcp.pop 64.0
        %v362 = vmul.f32 64.0, %v361
        %v363 = vsub.f32 1.0, %v362
        %v364 = vmul.f32 %v361, %v363
        %v365 = vadd.f32 %v361, %v364
        %vm366 = vweird.f32 %v361
        %v367 = vsel %vm366, %v361, %v365
        %v368 = vmul.f32 %v360, %v367
        %v369 = vsub.f32 %v356, %v368
        %v370 = vmul.f32 %v369, %v369
        %v371 = vsel %vm357, %v370, 0.0
        %372 = vadd.xlane.f32.xlu0 %v371
        %v373 = vpop.xlane.xlu0 %372
        %v374 = vmul.f32 %v373, %v367
        %v375 = vadd.f32 %v374, 1e-12
        %v376 = vrsqrt.pop %v375
        %v377 = vmul.f32 %v376, %v375
        %v378 = vmul.f32 %v377, %v376
        %v379 = vmul.f32 0.5, %v378
        %v380 = vsub.f32 1.5, %v379
        %v381 = vmul.f32 %v376, %v380
        %vm382 = vweird.f32 %v375
        %vm383 = vweird.f32 %v376
        %vm384 = vmor %vm382, %vm383
        %v385 = vsel %vm384, %v376, %v381
        %v386 = vmul.f32 %v369, %v385
        %v387 = vld [vmem:[%s3] sm:$0x1]
        %v389 = vperm.slane %v387, 0
        %v391 = vmul.f32 %v386, %v389
        %v392 = vld [vmem:[%s4] sm:$0x1]
        %v394 = vperm.slane %v392, 0
        %v396 = vadd.f32 %v391, %v394
        %397 = vst.msk [vmem:[%s321] sm:$0xff] %vm357, %v396
        %s398 = sand.u32 %s168, 1
        %s399 = scalar_lea.sflag [#allocation4], %s398
        %s400 = sand.u32 %s168, 1
        %s401 = smul.addr %s400, 8
        %s402 = scalar_lea.vmem [#allocation8], %s401
        // Predicated region
        $region57: #{tpu_custom_call.1} parent=43 // pred_check
          %p403 = pneg %p178
        $region58: #{tpu_custom_call.1} parent=43 // pred_check_branch
          %405 = sbr.rel (%p403) target = $region60
        $region59: #{tpu_custom_call.1} parent=43 // pred_region
          %407 = vsyncadd %s399, 0
          %s408 = smul.addr %s24, 8
          %s409 = scalar_lea.hbm %s6, %s408
          %s411 = sshll.u32 %s402, 4
          %s412 = int_to_ptr.vmem [resolvable:$true] %s411
          %s413 = sshll.u32 %s409, 4
          %s414 = int_to_ptr.hbm [resolvable:$true] %s413
          %416 = dma.vmem_to_hbm [thread:$0]  %s412, 128, %s414, %s399
        $region60: #{tpu_custom_call.1} parent=43 // pred_fallthru
          _
      $region44: #{tpu_custom_call.1} parent=5 // pred_fallthru
        _
      %p417 = scmp.le.s32.totalorder 2, %s19
      // Predicated region
      $region61: #{tpu_custom_call.1} parent=5 // pred_check
        %p418 = pneg %p417
      $region62: #{tpu_custom_call.1} parent=5 // pred_check_branch
        %420 = sbr.rel (%p418) target = $region64
      $region63: #{tpu_custom_call.1} parent=5 // pred_region
        %s421 = ssub.s32 %s19, 2
        // Predicated region
        $region65: #{tpu_custom_call.1} parent=63 // pred_check
          %p422 = pneg %p184
        $region66: #{tpu_custom_call.1} parent=63 // pred_check_branch
          %424 = sbr.rel (%p422) target = $region68
        $region67: #{tpu_custom_call.1} parent=63 // pred_region
          %s425 = sand.u32 %s169, 1
          %s426 = scalar_lea.sflag [#allocation4], %s425
          %s427 = sand.u32 %s169, 1
          %s428 = smul.addr %s427, 8
          %s429 = scalar_lea.vmem [#allocation8], %s428
          %431 = dma.done %s426, 128
        $region68: #{tpu_custom_call.1} parent=63 // pred_fallthru
          _
      $region64: #{tpu_custom_call.1} parent=5 // pred_fallthru
        _
    $region6: #{tpu_custom_call.1} parent=1 // loop_footer
      %s23 = sadd.s32 1, %s19
    $region7: #{tpu_custom_call.1} parent=1 // loop_footer_branch
      %18 = sbr.rel target = $region3
    $region8: #{tpu_custom_call.1} parent=1 // loop_exit
      _
    %432 = vsyncpa [#allocation3], 1
    %s433 = scalar_lea.sflag [#allocation3], 1
    %434 = vsyncpa %s433, 1
    %435 = vsyncpa [#allocation6], 1
    %436 = vsyncpa [#allocation4], 1
    %s437 = scalar_lea.sflag [#allocation4], 1
    %438 = vsyncpa %s437, 1

</llo_original>
